<compile_context>
chip_gen: v7x
topology: tpu7x:2x2x1
jax: 0.10.0
libtpu: 0.0.40
codegen_flags: <defaults>
</compile_context>

<pallas_src>
import functools

import jax
import jax.numpy as jnp
from jax.experimental import pallas as pl
from jax.experimental.pallas import tpu as pltpu

_LANES = 1024          # lane-dense width, multiple of 128
_MAX_ROW_TILE = 1024   # (1024, 1024) f32 block = 4 MiB -> 6 live tiles = 24 MiB


def _dice_loss_kernel(pred_ref, tgt_ref, out_ref, *, threshold, smooth):
    pred = pred_ref[...].astype(jnp.float32)
    tgt = tgt_ref[...].astype(jnp.float32)
    # (prediction > threshold).float() * target  (exact PyTorch semantics)
    inter = (pred > threshold).astype(jnp.float32) * tgt
    union = pred + tgt
    dice = (2.0 * inter + smooth) / (union + smooth)
    out_ref[...] = (1.0 - dice).astype(out_ref.dtype)


def _sublane_multiple(dtype):
    """Packed sublane count: 8 for 32-bit, 16 for 16-bit, 32 for 8-bit."""
    itemsize = int(jnp.dtype(dtype).itemsize)
    return max(8, 32 // max(itemsize, 1))


def _choose_row_tile(rows, sub):
    """Row-tile: multiple of `sub`, <= _MAX_ROW_TILE, and (when the input is
    bigger than one sublane group) small enough to give a grid of >= 2 steps
    so both v7x TensorCores get work."""
    if rows <= sub:
        # Single block equal to the full (tiny) row extent -- allowed because
        # the block dim equals the array dim.
        return rows
    half = -(-((rows + 1) // 2) // sub) * sub   # ceil(rows/2) rounded up to sub
    return max(sub, min(_MAX_ROW_TILE, half))


def dice_loss(prediction, target, smooth=1e-06):
    """Matches DiceLoss(smooth).forward(prediction, target) from utilities.py.

    Returns the elementwise loss of shape (batch, -1), exactly like the
    PyTorch module (no reduction is applied there).
    """
    assert prediction.shape == target.shape
    b = prediction.shape[0]
    n = 1
    for d in prediction.shape[1:]:
        n *= d
    total = b * n

    out_dtype = prediction.dtype
    sub = _sublane_multiple(out_dtype)

    # --- lane-dense repack: (total,) -> (rows, 1024). Reshape of a contiguous
    # array is free; jnp.pad (a full copy) only happens for the rare case
    # where total is not a multiple of 1024. ---
    rows = -(-total // _LANES)                  # ceil
    padded_total = rows * _LANES
    pad = padded_total - total

    pred_flat = prediction.reshape(-1)
    tgt_flat = target.reshape(-1)
    if pad:
        # Zero padding is harmless: dice(0,0) = smooth/smooth = 1 -> loss 0,
        # and the padded tail is sliced off below anyway.
        pred_flat = jnp.pad(pred_flat, (0, pad))
        tgt_flat = jnp.pad(tgt_flat, (0, pad))
    pred2d = pred_flat.reshape(rows, _LANES)
    tgt2d = tgt_flat.reshape(rows, _LANES)

    # NOTE: in the PyTorch forward, `self.smooth` is passed positionally into
    # the `threshold` slot of dice_score; the smoothing term stays at 1e-06.
    threshold = smooth
    eps = 1e-06

    kernel = functools.partial(_dice_loss_kernel, threshold=threshold, smooth=eps)

    tb = _choose_row_tile(rows, sub)
    grid = (pl.cdiv(rows, tb),)   # partial last block handled by Pallas

    itemsize = int(jnp.dtype(out_dtype).itemsize)
    cost = pl.CostEstimate(
        flops=7 * padded_total,
        transcendentals=0,
        bytes_accessed=3 * itemsize * padded_total,
    )

    out = pl.pallas_call(
        kernel,
        out_shape=jax.ShapeDtypeStruct((rows, _LANES), out_dtype),
        grid=grid,
        in_specs=[
            pl.BlockSpec((tb, _LANES), lambda i: (i, 0)),
            pl.BlockSpec((tb, _LANES), lambda i: (i, 0)),
        ],
        out_specs=pl.BlockSpec((tb, _LANES), lambda i: (i, 0)),
        compiler_params=pltpu.CompilerParams(
            dimension_semantics=("parallel",),
            vmem_limit_bytes=28 * 1024 * 1024,
        ),
        cost_estimate=cost,
    )(pred2d, tgt2d)

    if pad:
        return out.reshape(-1)[:total].reshape(b, n)
    return out.reshape(b, n)   # free reshape: zero-copy fast path


def _reference(prediction, target, smooth=1e-06):
    b = prediction.shape[0]
    pred = prediction.reshape(b, -1)
    tgt = target.reshape(b, -1)
    threshold = smooth  # same positional-arg quirk as the PyTorch module
    inter = (pred > threshold).astype(pred.dtype) * tgt
    union = pred + tgt
    dice = (2.0 * inter + 1e-06) / (union + 1e-06)
    return 1.0 - dice


if __name__ == "__main__":
    key = jax.random.PRNGKey(0)
    k1, k2 = jax.random.split(key)

    # batch=2, channels=4, spatial=16x16 (NCHW, like the PyTorch inputs).
    # total = 2048 -> zero-copy fast path (no pad, no output slice).
    pred = jax.random.uniform(k1, (2, 4, 16, 16), dtype=jnp.float32)
    tgt = (jax.random.uniform(k2, (2, 4, 16, 16)) > 0.5).astype(jnp.float32)

    out = dice_loss(pred, tgt)
    jax.block_until_ready(out)

    ref = _reference(pred, tgt)
    assert out.shape == (2, 4 * 16 * 16)
    assert jnp.allclose(out, ref, atol=1e-5, rtol=1e-5)

    # Also exercise the padded (total % 1024 != 0) path once.
    pred2 = jax.random.uniform(k1, (3, 5, 7, 11), dtype=jnp.float32)
    tgt2 = (jax.random.uniform(k2, (3, 5, 7, 11)) > 0.5).astype(jnp.float32)
    out2 = dice_loss(pred2, tgt2)
    jax.block_until_ready(out2)
    assert out2.shape == (3, 5 * 7 * 11)
    assert jnp.allclose(out2, _reference(pred2, tgt2), atol=1e-5, rtol=1e-5)

    print("KERNEL_OK")
</pallas_src>

<mosaic_0001>
module attributes {stable_mosaic.version = 11 : i64} {
  func.func @_dice_loss_kernel(%arg0: i32, %arg1: memref<2x1024xf32, #tpu.memory_space<vmem>>, %arg2: memref<2x1024xf32, #tpu.memory_space<vmem>>, %arg3: memref<2x1024xf32, #tpu.memory_space<vmem>>) attributes {dimension_semantics = [#tpu.dimension_semantics<parallel>], iteration_bounds = array<i64: 1>, scalar_prefetch = 0 : i64, scratch_operands = 0 : i64, tpu.core_type = #tpu.core_type<tc>, window_params = [{transform_indices = @transform_0, window_bounds = array<i64: 2, 1024>}, {transform_indices = @transform_1, window_bounds = array<i64: 2, 1024>}, {transform_indices = @transform_2, window_bounds = array<i64: 2, 1024>}]} {
    %c0 = arith.constant 0 : index
    %c0_0 = arith.constant 0 : index
    %0 = vector.load %arg1[%c0, %c0_0] : memref<2x1024xf32, #tpu.memory_space<vmem>>, vector<2x1024xf32>
    %c0_1 = arith.constant 0 : index
    %c0_2 = arith.constant 0 : index
    %1 = vector.load %arg2[%c0_1, %c0_2] : memref<2x1024xf32, #tpu.memory_space<vmem>>, vector<2x1024xf32>
    %cst = arith.constant 9.99999997E-7 : f32
    %2 = vector.broadcast %cst : f32 to vector<2x1024xf32>
    %3 = arith.cmpf ogt, %0, %2 : vector<2x1024xf32>
    %4 = arith.extui %3 : vector<2x1024xi1> to vector<2x1024xi32>
    %5 = arith.sitofp %4 : vector<2x1024xi32> to vector<2x1024xf32>
    %6 = arith.mulf %5, %1 : vector<2x1024xf32>
    %7 = arith.addf %0, %1 : vector<2x1024xf32>
    %cst_3 = arith.constant 2.000000e+00 : f32
    %8 = vector.broadcast %cst_3 : f32 to vector<2x1024xf32>
    %9 = arith.mulf %8, %6 : vector<2x1024xf32>
    %cst_4 = arith.constant 9.99999997E-7 : f32
    %10 = vector.broadcast %cst_4 : f32 to vector<2x1024xf32>
    %11 = arith.addf %9, %10 : vector<2x1024xf32>
    %cst_5 = arith.constant 9.99999997E-7 : f32
    %12 = vector.broadcast %cst_5 : f32 to vector<2x1024xf32>
    %13 = arith.addf %7, %12 : vector<2x1024xf32>
    %14 = arith.divf %11, %13 : vector<2x1024xf32>
    %cst_6 = arith.constant 1.000000e+00 : f32
    %15 = vector.broadcast %cst_6 : f32 to vector<2x1024xf32>
    %16 = arith.subf %15, %14 : vector<2x1024xf32>
    %c0_7 = arith.constant 0 : index
    %c0_8 = arith.constant 0 : index
    %17 = vector.load %arg3[%c0_7, %c0_8] : memref<2x1024xf32, #tpu.memory_space<vmem>>, vector<2x1024xf32>
    tpu.vector_store %arg3[%c0_7, %c0_8], %16 {strides = array<i32>} : memref<2x1024xf32, #tpu.memory_space<vmem>>, vector<2x1024xf32>,
    return
  }
  func.func @transform_0(%arg0: i32) -> (i32, i32) {
    %c0_i32 = arith.constant 0 : i32
    %c0_i32_0 = arith.constant 0 : i32
    return %arg0, %c0_i32 : i32, i32
  }
  func.func @transform_1(%arg0: i32) -> (i32, i32) {
    %c0_i32 = arith.constant 0 : i32
    %c0_i32_0 = arith.constant 0 : i32
    return %arg0, %c0_i32 : i32, i32
  }
  func.func @transform_2(%arg0: i32) -> (i32, i32) {
    %c0_i32 = arith.constant 0 : i32
    %c0_i32_0 = arith.constant 0 : i32
    return %arg0, %c0_i32 : i32, i32
  }
}

</mosaic_0001>

<llo_original>
// kernel: tpu_custom_call.1
$region0: #{tpu_custom_call.1}
  #allocation0 [shape = 'u32[]', space=smem, size = 0x4, offset = 0x4, fixed_abs, tag = 'smem constant byte address 0x4 - core index']
  #allocation1 [shape = 'u32[144,128]{1,0:T(1,128)}', space=vmem, size = 0x12000, scoped, tag = 'internal scratch']
  %s0 = inlined_call_operand.hbm [shape: f32[2,1024], index: 0, kind: input, shape index: {}]
  %s1 = inlined_call_operand.hbm [shape: f32[2,1024], index: 1, kind: input, shape index: {}]
  %s2 = inlined_call_operand.hbm [shape: f32[2,1024], index: 2, kind: output, shape index: {}]
  %s3 = sld [smem:[#allocation0]]
  $region26: #{tpu_custom_call.1} parent=0
    _
  %s5 = ssub.s32 1, %s3
  %s6 = scalar_select 0, %s5, %s3
  $region1: #{tpu_custom_call.1} parent=0
    #allocation2 [shape = 'u8[8192]{0}', space=vmem, size = 0x2000, scoped, tag = 'input window, operand 0, single buffered']
    #allocation3 [shape = 's32[1]{0}', space=sflag, size = 0x4, scoped, tag = 'scoped memory for tpu_custom_call.1']
    #allocation4 [shape = 's32[1]{0}', space=sflag, size = 0x4, scoped, tag = 'scoped memory for tpu_custom_call.1']
    #allocation5 [shape = 'u8[8192]{0}', space=vmem, size = 0x2000, scoped, tag = 'input window, operand 1, single buffered']
    #allocation6 [shape = 's32[1]{0}', space=sflag, size = 0x4, scoped, tag = 'scoped memory for tpu_custom_call.1']
    #allocation7 [shape = 'u8[8192]{0}', space=vmem, size = 0x2000, scoped, tag = 'output window, operand 0, single buffered']
    %7 = vsyncpa [#allocation3], 0
    %8 = vsyncpa [#allocation6], 0
    %9 = vsyncpa [#allocation4], 0
    // Predicated region
    $region2: #{tpu_custom_call.1} parent=1 // pred_check
      _
    $region3: #{tpu_custom_call.1} parent=1 // pred_check_branch
      %11 = sbr.rel (0) target = $region5
    $region4: #{tpu_custom_call.1} parent=1 // pred_region
      %s13 = ssub.s32 256, 256
      %14 = vsyncadd [#allocation3], %s13
      %s16 = sshll.u32 [#allocation2], 4
      %s17 = int_to_ptr.vmem [resolvable:$true] %s16
      %19 = dma.hbm_to_vmem [thread:$0]  %s0, 256, %s17, [#allocation3]
    $region5: #{tpu_custom_call.1} parent=1 // pred_fallthru
      _
    // Predicated region
    $region6: #{tpu_custom_call.1} parent=1 // pred_check
      _
    $region7: #{tpu_custom_call.1} parent=1 // pred_check_branch
      %21 = sbr.rel (0) target = $region9
    $region8: #{tpu_custom_call.1} parent=1 // pred_region
      %s23 = ssub.s32 256, 256
      %24 = vsyncadd [#allocation6], %s23
      %s26 = sshll.u32 [#allocation5], 4
      %s27 = int_to_ptr.vmem [resolvable:$true] %s26
      %29 = dma.hbm_to_vmem [thread:$0]  %s1, 256, %s27, [#allocation6]
    $region9: #{tpu_custom_call.1} parent=1 // pred_fallthru
      _
    // Predicated region
    $region10: #{tpu_custom_call.1} parent=1 // pred_check
      _
    $region11: #{tpu_custom_call.1} parent=1 // pred_check_branch
      %31 = sbr.rel (0) target = $region13
    $region12: #{tpu_custom_call.1} parent=1 // pred_region
      %32 = dma.done [#allocation3], 256
    $region13: #{tpu_custom_call.1} parent=1 // pred_fallthru
      _
    // Predicated region
    $region14: #{tpu_custom_call.1} parent=1 // pred_check
      _
    $region15: #{tpu_custom_call.1} parent=1 // pred_check_branch
      %34 = sbr.rel (0) target = $region17
    $region16: #{tpu_custom_call.1} parent=1 // pred_region
      %35 = dma.done [#allocation6], 256
    $region17: #{tpu_custom_call.1} parent=1 // pred_fallthru
      _
    %v36 = vld [vmem:[#allocation2] sm:$0xff]
    %v37 = vld [vmem:[#allocation2 + $0x8] sm:$0xff]
    %v38 = vld [vmem:[#allocation5] sm:$0xff]
    %v39 = vld [vmem:[#allocation5 + $0x8] sm:$0xff]
    %vm40 = vcmp.gt.f32.partialorder %v36, 1e-06
    %vm41 = vcmp.gt.f32.partialorder %v37, 1e-06
    %v42 = vsel %vm40, 1, 0
    %v43 = vsel %vm41, 1, 0
    %v44 = vcvt.s32.f32 %v42
    %v45 = vcvt.s32.f32 %v43
    %v46 = vmul.f32 %v44, %v38
    %v47 = vmul.f32 %v45, %v39
    %v48 = vadd.f32 %v36, %v38
    %v49 = vadd.f32 %v37, %v39
    %v50 = vmul.f32 %v46, 2.0
    %v51 = vmul.f32 %v47, 2.0
    %v52 = vadd.f32 %v50, 1e-06
    %v53 = vadd.f32 %v51, 1e-06
    %v54 = vadd.f32 %v48, 1e-06
    %v55 = vadd.f32 %v49, 1e-06
    %v56 = vrcp.pop %v54
    %v57 = vmul.f32 %v52, %v56
    %v58 = vrcp.pop %v55
    %v59 = vmul.f32 %v53, %v58
    %v60 = vsub.f32 1.0, %v57
    %v61 = vsub.f32 1.0, %v59
    %62 = vst [vmem:[#allocation7] sm:$0xff] %v60
    %63 = vst [vmem:[#allocation7 + $0x8] sm:$0xff] %v61
    // Predicated region
    $region18: #{tpu_custom_call.1} parent=1 // pred_check
      _
    $region19: #{tpu_custom_call.1} parent=1 // pred_check_branch
      %65 = sbr.rel (0) target = $region21
    $region20: #{tpu_custom_call.1} parent=1 // pred_region
      %s67 = ssub.s32 256, 256
      %68 = vsyncadd [#allocation4], %s67
      %s70 = sshll.u32 [#allocation7], 4
      %s71 = int_to_ptr.vmem [resolvable:$true] %s70
      %73 = dma.vmem_to_hbm [thread:$0]  %s71, 256, %s2, [#allocation4]
    $region21: #{tpu_custom_call.1} parent=1 // pred_fallthru
      _
    // Predicated region
    $region22: #{tpu_custom_call.1} parent=1 // pred_check
      _
    $region23: #{tpu_custom_call.1} parent=1 // pred_check_branch
      %75 = sbr.rel (0) target = $region25
    $region24: #{tpu_custom_call.1} parent=1 // pred_region
      %76 = dma.done [#allocation4], 256
    $region25: #{tpu_custom_call.1} parent=1 // pred_fallthru
      _
    %77 = vsyncpa [#allocation3], 1
    %78 = vsyncpa [#allocation6], 1
    %79 = vsyncpa [#allocation4], 1

</llo_original>
